<compile_context>
chip_gen: v5e
topology: v5e:2x2
jax: 0.10.0
libtpu: 0.0.40
codegen_flags: <defaults>
</compile_context>

<pallas_src>
import jax
import jax.numpy as jnp
from jax.experimental import pallas as pl
from jax.experimental.pallas import tpu as pltpu

BN_EPS = 1e-5
BIG = 3.0e38          # Python float -> baked literal, masks padded LUT rows
_CHUNK_N = 256        # in-kernel sub-chunk width (lanes) for the distance scan
_INT_MAX = 2147483647


# --------------------------------------------------------------------------- #
# Kernel A: left NN + streamed argmin over the LUT keys
# --------------------------------------------------------------------------- #
def argmin_kernel(
    x_ref,                    # [TB, Fp]      resident across the LUT axis
    wl0_ref, bl0_ref,         # left Linear0 (BN folded)
    wl1_ref, bl1_ref,         # left Linear1, pre-scaled by -2 with ones column
    lutkT_ref,                # [Ka, TN]      transposed LUT keys + k2 row
    idx_ref,                  # [TB, 128]     best global LUT row index (out)
    keys_s,                   # scratch [TB, Ka]   augmented predicted keys
    min_s,                    # scratch [TB, 1]    running best score
    idx_s,                    # scratch [TB, 1]    running best global index
):
    j = pl.program_id(1)
    nj = pl.num_programs(1)

    # ---- first LUT block for this batch tile: run left NN, init running min
    @pl.when(j == 0)
    def _():
        x = x_ref[...]
        h = jnp.dot(x, wl0_ref[...], preferred_element_type=jnp.float32) + bl0_ref[...]
        h = jnp.maximum(h, 0.0)                     # ReLU (dropout = id @ eval)
        # wl1/bl1 were augmented in the wrapper: columns 0..K-1 give -2*keys,
        # column K is the constant 1 (multiplies the k2 row of lutkT).
        keys_s[...] = (
            jnp.dot(h, wl1_ref[...], preferred_element_type=jnp.float32) + bl1_ref[...]
        )
        min_s[...] = jnp.full(min_s.shape, BIG, jnp.float32)
        idx_s[...] = jnp.zeros(idx_s.shape, jnp.int32)

    keys_aug = keys_s[...]                          # [TB, Ka]
    tb = keys_aug.shape[0]
    tile_n = lutkT_ref.shape[1]
    n_chunks = tile_n // _CHUNK_N                   # static
    base = j * tile_n                               # global column offset

    def body(c, carry):
        m, bi = carry
        off = pl.multiple_of(c * _CHUNK_N, _CHUNK_N)
        lut_chunk = lutkT_ref[:, pl.ds(off, _CHUNK_N)]                # [Ka, CN]
        # d = |lut_k|^2 - 2*keys.lut_k  (|keys|^2 dropped: argmin-invariant)
        d = jnp.dot(keys_aug, lut_chunk,
                    preferred_element_type=jnp.float32)               # [TB, CN]
        col = jax.lax.broadcasted_iota(jnp.int32, (tb, _CHUNK_N), 1) + (base + off)
        cmin = jnp.min(d, axis=1, keepdims=True)                      # [TB, 1]
        cidx = jnp.min(jnp.where(d == cmin, col, _INT_MAX),
                       axis=1, keepdims=True)       # first occurrence in chunk
        better = cmin < m                           # strict <: earlier idx wins ties
        return jnp.where(better, cmin, m), jnp.where(better, cidx, bi)

    m_fin, i_fin = jax.lax.fori_loop(0, n_chunks, body, (min_s[...], idx_s[...]))
    min_s[...] = m_fin
    idx_s[...] = i_fin

    # ---- last LUT block: emit the winning index (lane-dense int32 store) ---
    @pl.when(j == nj - 1)
    def _():
        idx_ref[...] = jnp.broadcast_to(idx_s[...], idx_ref.shape)


# --------------------------------------------------------------------------- #
# Kernel B: residual + right NN
# --------------------------------------------------------------------------- #
def residual_mlp_kernel(x_ref, closest_ref, wr0_ref, br0_ref, wr1_ref, br1_ref,
                        out_ref):
    resid = x_ref[...] - closest_ref[...]
    h = jnp.dot(resid, wr0_ref[...], preferred_element_type=jnp.float32) + br0_ref[...]
    h = jnp.maximum(h, 0.0)
    out_ref[...] = (
        jnp.dot(h, wr1_ref[...], preferred_element_type=jnp.float32) + br1_ref[...]
    )


# --------------------------------------------------------------------------- #
# Wrapper
# --------------------------------------------------------------------------- #
def _round_up(n, m):
    return ((n + m - 1) // m) * m


def _pad_to(a, shape):
    return jnp.pad(a, [(0, t - s) for s, t in zip(a.shape, shape)])


def _fold_bn(w, b, g, beta, m, v):
    """Fold inference BatchNorm1d into the preceding Linear."""
    scale = g * jax.lax.rsqrt(v + BN_EPS)           # [1, H]
    return w * scale, (b - m) * scale + beta


def feature_residual_network(x, params, lookup_table, key_indices, feature_indices,
                             *, tile_b=128, tile_n=2048):
    # Column slicing of the lookup table happens once, outside the kernel.
    lut_keys = lookup_table[:, key_indices].astype(jnp.float32)       # [N, K]
    lut_feats = lookup_table[:, feature_indices].astype(jnp.float32)  # [N, F]

    B, F = x.shape
    N, K = lut_keys.shape
    Hl = params["wl0"].shape[1]
    Hr = params["wr0"].shape[1]
    OUT = params["wr1"].shape[1]

    # Fold BatchNorm into the first Linear of each sub-net (inference-equivalent).
    wl0, bl0 = _fold_bn(params["wl0"], params["bl0"], params["gl0"],
                        params["betal0"], params["ml0"], params["vl0"])
    wr0, br0 = _fold_bn(params["wr0"], params["br0"], params["gr0"],
                        params["betar0"], params["mr0"], params["vr0"])
    wl1, bl1 = params["wl1"], params["bl1"]
    wr1, br1 = params["wr1"], params["br1"]

    f32 = jnp.float32

    # Padded sizes.  LUT keys are sublane-packed (pad K+1 to 8, NOT to 128).
    F_pad = _round_up(F, 128)
    Hl_pad = _round_up(Hl, 128)
    Hr_pad = _round_up(Hr, 128)
    OUT_pad = _round_up(OUT, 128)
    K_aug = _round_up(K + 1, 8)

    TILE_B = min(tile_b, _round_up(B, 8))           # multiple of 8
    B_pad = _round_up(B, TILE_B)
    # NOTE(v7x): for large B pick TILE_B <= B_pad/2 so grid[0] >= 2 and both
    # TensorCores get batch tiles.
    TILE_N = _round_up(min(tile_n, _round_up(N, _CHUNK_N)), _CHUNK_N)
    N_pad = _round_up(N, TILE_N)

    # ----- left NN inputs (augmented so distance is a single MXU matmul) ----
    xp = _pad_to(x.astype(f32), (B_pad, F_pad))
    wl0p, bl0p = _pad_to(wl0, (F_pad, Hl_pad)), _pad_to(bl0, (1, Hl_pad))
    # wl1_aug: cols 0..K-1 = -2*wl1 ; bl1_aug: cols 0..K-1 = -2*bl1, col K = 1.
    wl1a = jnp.zeros((Hl_pad, K_aug), f32).at[:Hl, :K].set(-2.0 * wl1)
    bl1a = jnp.zeros((1, K_aug), f32).at[:, :K].set(-2.0 * bl1).at[:, K].set(1.0)

    # ----- transposed, sublane-packed LUT keys with fused |k|^2 row ---------
    k2 = jnp.sum(lut_keys * lut_keys, axis=1)                         # [N]
    k2_row = jnp.full((N_pad,), BIG, f32).at[:N].set(k2)              # BIG masks pad rows
    lutkT = (jnp.zeros((K_aug, N_pad), f32)
             .at[:K, :N].set(lut_keys.T)
             .at[K, :].set(k2_row))

    # ----- right NN inputs --------------------------------------------------
    wr0p, br0p = _pad_to(wr0, (F_pad, Hr_pad)), _pad_to(br0, (1, Hr_pad))
    wr1p, br1p = _pad_to(wr1, (Hr_pad, OUT_pad)), _pad_to(br1, (1, OUT_pad))

    const2 = lambda i, j: (0, 0)
    const1 = lambda i: (0, 0)

    # ------------------- Kernel A: left NN + streamed argmin ----------------
    idx_full = pl.pallas_call(
        argmin_kernel,
        out_shape=jax.ShapeDtypeStruct((B_pad, 128), jnp.int32),
        grid_spec=pltpu.PrefetchScalarGridSpec(
            num_scalar_prefetch=0,
            grid=(B_pad // TILE_B, N_pad // TILE_N),
            in_specs=[
                pl.BlockSpec((TILE_B, F_pad), lambda i, j: (i, 0)),   # x (resident over j)
                pl.BlockSpec((F_pad, Hl_pad), const2),                # wl0 (BN folded)
                pl.BlockSpec((1, Hl_pad), const2),                    # bl0
                pl.BlockSpec((Hl_pad, K_aug), const2),                # wl1 (augmented)
                pl.BlockSpec((1, K_aug), const2),                     # bl1 (augmented)
                pl.BlockSpec((K_aug, TILE_N), lambda i, j: (0, j)),   # LUT keys^T block
            ],
            out_specs=pl.BlockSpec((TILE_B, 128), lambda i, j: (i, 0)),
            scratch_shapes=[
                pltpu.VMEM((TILE_B, K_aug), f32),     # augmented predicted keys
                pltpu.VMEM((TILE_B, 1), f32),         # running min score
                pltpu.VMEM((TILE_B, 1), jnp.int32),   # running best global index
            ],
        ),
        compiler_params=pltpu.CompilerParams(
            dimension_semantics=("parallel", "arbitrary"),
            vmem_limit_bytes=32 * 1024 * 1024,        # safe on v5e/v6e/v7x
        ),
    )(xp, wl0p, bl0p, wl1a, bl1a, lutkT)

    # ------------- XLA row gather of the winning LUT feature rows -----------
    best_idx = idx_full[:B, 0]                                        # [B] int32
    closest = jnp.take(lut_feats, best_idx, axis=0)                   # [B, F]
    closest_p = _pad_to(closest, (B_pad, F_pad))

    # ------------------- Kernel B: residual + right NN ----------------------
    out = pl.pallas_call(
        residual_mlp_kernel,
        out_shape=jax.ShapeDtypeStruct((B_pad, OUT_pad), f32),
        grid_spec=pltpu.PrefetchScalarGridSpec(
            num_scalar_prefetch=0,
            grid=(B_pad // TILE_B,),
            in_specs=[
                pl.BlockSpec((TILE_B, F_pad), lambda i: (i, 0)),      # x
                pl.BlockSpec((TILE_B, F_pad), lambda i: (i, 0)),      # gathered features
                pl.BlockSpec((F_pad, Hr_pad), const1),                # wr0 (BN folded)
                pl.BlockSpec((1, Hr_pad), const1),                    # br0
                pl.BlockSpec((Hr_pad, OUT_pad), const1),              # wr1
                pl.BlockSpec((1, OUT_pad), const1),                   # br1
            ],
            out_specs=pl.BlockSpec((TILE_B, OUT_pad), lambda i: (i, 0)),
        ),
        compiler_params=pltpu.CompilerParams(
            dimension_semantics=("parallel",),
            vmem_limit_bytes=32 * 1024 * 1024,
        ),
    )(xp, closest_p, wr0p, br0p, wr1p, br1p)

    return out[:B, :OUT]


# --------------------------------------------------------------------------- #
# Deterministic synthetic params + pure-JAX reference
# --------------------------------------------------------------------------- #
def _init_params(key, f_in, hidden, k_dim, out_dim):
    ks = jax.random.split(key, 8)

    def lin(k, fan_in, fan_out):
        kw, kb = jax.random.split(k)
        bound = 1.0 / jnp.sqrt(fan_in)
        w = jax.random.uniform(kw, (fan_in, fan_out), jnp.float32, -bound, bound)
        b = jax.random.uniform(kb, (1, fan_out), jnp.float32, -bound, bound)
        return w, b

    def bn(k, n):
        k1, k2, k3, k4 = jax.random.split(k, 4)
        g = jax.random.uniform(k1, (1, n), jnp.float32, 0.5, 1.5)
        beta = 0.1 * jax.random.normal(k2, (1, n), jnp.float32)
        m = 0.1 * jax.random.normal(k3, (1, n), jnp.float32)
        v = jax.random.uniform(k4, (1, n), jnp.float32, 0.5, 1.5)
        return g, beta, m, v

    p = {}
    p["wl0"], p["bl0"] = lin(ks[0], f_in, hidden)
    p["gl0"], p["betal0"], p["ml0"], p["vl0"] = bn(ks[1], hidden)
    p["wl1"], p["bl1"] = lin(ks[2], hidden, k_dim)
    p["wr0"], p["br0"] = lin(ks[3], f_in, hidden)
    p["gr0"], p["betar0"], p["mr0"], p["vr0"] = bn(ks[4], hidden)
    p["wr1"], p["br1"] = lin(ks[5], hidden, out_dim)
    return p


def _reference(x, params, lut_keys, lut_feats):
    def bn(h, g, b, m, v):
        return (h - m) * jax.lax.rsqrt(v + BN_EPS) * g + b

    h = jnp.maximum(bn(x @ params["wl0"] + params["bl0"],
                       params["gl0"], params["betal0"],
                       params["ml0"], params["vl0"]), 0.0)
    keys = h @ params["wl1"] + params["bl1"]
    d2 = jnp.sum((keys[:, None, :] - lut_keys[None, :, :]) ** 2, axis=-1)
    idx = jnp.argmin(d2, axis=1)                     # torch.cdist+argmin semantics
    resid = x - lut_feats[idx]
    h2 = jnp.maximum(bn(resid @ params["wr0"] + params["br0"],
                        params["gr0"], params["betar0"],
                        params["mr0"], params["vr0"]), 0.0)
    return h2 @ params["wr1"] + params["br1"]


if __name__ == "__main__":
    # node_count_left  = [F_IN, HIDDEN, K], node_count_right = [F_IN, HIDDEN, OUT]
    B, F_IN, HIDDEN, K, OUT, N_ROWS = 20, 8, 32, 4, 2, 700

    root = jax.random.PRNGKey(0)
    k_x, k_tab, k_par = jax.random.split(root, 3)

    x = jax.random.normal(k_x, (B, F_IN), jnp.float32)
    lookup_table = jax.random.normal(k_tab, (N_ROWS, K + F_IN), jnp.float32)
    lookup_key_indices = jnp.arange(0, K, dtype=jnp.int32)
    feature_indices = jnp.arange(K, K + F_IN, dtype=jnp.int32)

    params = _init_params(k_par, F_IN, HIDDEN, K, OUT)

    # tile_n=512 -> TILE_N=512, N_pad=1024: exercises multi-block LUT streaming,
    # in-kernel sub-chunking (2 chunks/block) and padded-row masking.
    out = feature_residual_network(x, params, lookup_table,
                                   lookup_key_indices, feature_indices,
                                   tile_n=512)
    out = jax.block_until_ready(out)

    ref = _reference(x, params,
                     lookup_table[:, lookup_key_indices],
                     lookup_table[:, feature_indices])
    assert out.shape == (B, OUT)
    assert jnp.allclose(out, ref, atol=1e-4, rtol=1e-4), "mismatch vs JAX reference"

    print("KERNEL_OK")
</pallas_src>

<mosaic_0001>
module attributes {stable_mosaic.version = 11 : i64} {
  func.func @argmin_kernel(%arg0: i32, %arg1: i32, %arg2: memref<24x128xf32, #tpu.memory_space<vmem>>, %arg3: memref<128x128xf32, #tpu.memory_space<vmem>>, %arg4: memref<1x128xf32, #tpu.memory_space<vmem>>, %arg5: memref<128x8xf32, #tpu.memory_space<vmem>>, %arg6: memref<1x8xf32, #tpu.memory_space<vmem>>, %arg7: memref<8x512xf32, #tpu.memory_space<vmem>>, %arg8: memref<24x128xi32, #tpu.memory_space<vmem>>, %arg9: memref<24x8xf32, #tpu.memory_space<vmem>>, %arg10: memref<24x1xf32, #tpu.memory_space<vmem>>, %arg11: memref<24x1xi32, #tpu.memory_space<vmem>>) attributes {dimension_semantics = [#tpu.dimension_semantics<parallel>, #tpu.dimension_semantics<arbitrary>], iteration_bounds = array<i64: 1, 2>, scalar_prefetch = 0 : i64, scratch_operands = 3 : i64, tpu.core_type = #tpu.core_type<tc>, window_params = [{transform_indices = @transform_0, window_bounds = array<i64: 24, 128>}, {pipeline_mode = #tpu.pipeline_mode<synchronous>, transform_indices = @transform_1, window_bounds = array<i64: 128, 128>}, {pipeline_mode = #tpu.pipeline_mode<synchronous>, transform_indices = @transform_2, window_bounds = array<i64: 1, 128>}, {pipeline_mode = #tpu.pipeline_mode<synchronous>, transform_indices = @transform_3, window_bounds = array<i64: 128, 8>}, {pipeline_mode = #tpu.pipeline_mode<synchronous>, transform_indices = @transform_4, window_bounds = array<i64: 1, 8>}, {transform_indices = @transform_5, window_bounds = array<i64: 8, 512>}, {transform_indices = @transform_6, window_bounds = array<i64: 24, 128>}]} {
    %c0_i32 = arith.constant 0 : i32
    %0 = arith.cmpi eq, %arg1, %c0_i32 : i32
    %1 = arith.extui %0 : i1 to i32
    %c0_i32_0 = arith.constant 0 : i32
    %2 = arith.cmpi ne, %1, %c0_i32_0 : i32
    scf.if %2 {
      %c0_14 = arith.constant 0 : index
      %c0_15 = arith.constant 0 : index
      %14 = vector.load %arg2[%c0_14, %c0_15] : memref<24x128xf32, #tpu.memory_space<vmem>>, vector<24x128xf32>
      %c0_16 = arith.constant 0 : index
      %c0_17 = arith.constant 0 : index
      %15 = vector.load %arg3[%c0_16, %c0_17] : memref<128x128xf32, #tpu.memory_space<vmem>>, vector<128x128xf32>
      %cst = arith.constant dense<0.000000e+00> : vector<24x128xf32>
      %16 = tpu.matmul %14, %15, %cst {dimension_numbers = #tpu.dot_dimension_numbers<[1], [0], [0], [1], [0, 0, 1, 1], [], []>} : vector<24x128xf32>, vector<128x128xf32>, vector<24x128xf32> -> vector<24x128xf32>
      %c0_18 = arith.constant 0 : index
      %c0_19 = arith.constant 0 : index
      %17 = vector.load %arg4[%c0_18, %c0_19] : memref<1x128xf32, #tpu.memory_space<vmem>>, vector<1x128xf32>
      %18 = vector.broadcast %17 : vector<1x128xf32> to vector<24x128xf32>
      %19 = arith.addf %16, %18 : vector<24x128xf32>
      %cst_20 = arith.constant 0.000000e+00 : f32
      %20 = vector.broadcast %cst_20 : f32 to vector<24x128xf32>
      %21 = arith.maximumf %19, %20 : vector<24x128xf32>
      %c0_21 = arith.constant 0 : index
      %c0_22 = arith.constant 0 : index
      %22 = vector.load %arg5[%c0_21, %c0_22] : memref<128x8xf32, #tpu.memory_space<vmem>>, vector<128x8xf32>
      %cst_23 = arith.constant dense<0.000000e+00> : vector<24x8xf32>
      %23 = tpu.matmul %21, %22, %cst_23 {dimension_numbers = #tpu.dot_dimension_numbers<[1], [0], [0], [1], [0, 0, 1, 1], [], []>} : vector<24x128xf32>, vector<128x8xf32>, vector<24x8xf32> -> vector<24x8xf32>
      %c0_24 = arith.constant 0 : index
      %c0_25 = arith.constant 0 : index
      %24 = vector.load %arg6[%c0_24, %c0_25] : memref<1x8xf32, #tpu.memory_space<vmem>>, vector<1x8xf32>
      %25 = vector.broadcast %24 : vector<1x8xf32> to vector<24x8xf32>
      %26 = arith.addf %23, %25 : vector<24x8xf32>
      %c0_26 = arith.constant 0 : index
      %c0_27 = arith.constant 0 : index
      %27 = vector.load %arg9[%c0_26, %c0_27] : memref<24x8xf32, #tpu.memory_space<vmem>>, vector<24x8xf32>
      tpu.vector_store %arg9[%c0_26, %c0_27], %26 {strides = array<i32>} : memref<24x8xf32, #tpu.memory_space<vmem>>, vector<24x8xf32>,
      %cst_28 = arith.constant 3.000000e+38 : f32
      %28 = vector.broadcast %cst_28 : f32 to vector<24x1xf32>
      %c0_29 = arith.constant 0 : index
      %c0_30 = arith.constant 0 : index
      %29 = vector.load %arg10[%c0_29, %c0_30] : memref<24x1xf32, #tpu.memory_space<vmem>>, vector<24x1xf32>
      tpu.vector_store %arg10[%c0_29, %c0_30], %28 {strides = array<i32>} : memref<24x1xf32, #tpu.memory_space<vmem>>, vector<24x1xf32>,
      %c0_i32_31 = arith.constant 0 : i32
      %30 = vector.broadcast %c0_i32_31 : i32 to vector<24x1xi32>
      %c0_32 = arith.constant 0 : index
      %c0_33 = arith.constant 0 : index
      %31 = vector.load %arg11[%c0_32, %c0_33] : memref<24x1xi32, #tpu.memory_space<vmem>>, vector<24x1xi32>
      tpu.vector_store %arg11[%c0_32, %c0_33], %30 {strides = array<i32>} : memref<24x1xi32, #tpu.memory_space<vmem>>, vector<24x1xi32>,
    } else {
    }
    %c0 = arith.constant 0 : index
    %c0_1 = arith.constant 0 : index
    %3 = vector.load %arg9[%c0, %c0_1] : memref<24x8xf32, #tpu.memory_space<vmem>>, vector<24x8xf32>
    %c512_i32 = arith.constant 512 : i32
    %4 = arith.muli %arg1, %c512_i32 : i32
    %c0_2 = arith.constant 0 : index
    %c0_3 = arith.constant 0 : index
    %5 = vector.load %arg10[%c0_2, %c0_3] : memref<24x1xf32, #tpu.memory_space<vmem>>, vector<24x1xf32>
    %c0_4 = arith.constant 0 : index
    %c0_5 = arith.constant 0 : index
    %6 = vector.load %arg11[%c0_4, %c0_5] : memref<24x1xi32, #tpu.memory_space<vmem>>, vector<24x1xi32>
    %c0_i32_6 = arith.constant 0 : i32
    %c2_i32 = arith.constant 2 : i32
    %7 = arith.addi %c0_i32_6, %c2_i32 : i32
    %c1_i32 = arith.constant 1 : i32
    %8:2 = scf.for %arg12 = %c0_i32_6 to %7 step %c1_i32 iter_args(%arg13 = %5, %arg14 = %6) -> (vector<24x1xf32>, vector<24x1xi32>)  : i32 {
      %c256_i32 = arith.constant 256 : i32
      %14 = arith.muli %arg12, %c256_i32 : i32
      %15 = tpu.assume_multiple %14, 256 : i32
      %c0_14 = arith.constant 0 : index
      %16 = arith.index_cast %15 : i32 to index
      %17 = vector.load %arg7[%c0_14, %16] : memref<8x512xf32, #tpu.memory_space<vmem>>, vector<8x256xf32>
      %cst = arith.constant dense<0.000000e+00> : vector<24x256xf32>
      %18 = tpu.matmul %3, %17, %cst {dimension_numbers = #tpu.dot_dimension_numbers<[1], [0], [0], [1], [0, 0, 1, 1], [], []>} : vector<24x8xf32>, vector<8x256xf32>, vector<24x256xf32> -> vector<24x256xf32>
      %19 = tpu.iota {dimensions = array<i32: 1>} : vector<24x256xi32>
      %20 = arith.addi %4, %15 : i32
      %21 = vector.broadcast %20 : i32 to vector<24x256xi32>
      %22 = arith.addi %19, %21 : vector<24x256xi32>
      %cst_15 = arith.constant dense<0x7F800000> : vector<24xf32>
      %23 = vector.multi_reduction <minimumf>, %18, %cst_15 [1] : vector<24x256xf32> to vector<24xf32>
      %24 = vector.shape_cast %23 : vector<24xf32> to vector<24x1xf32>
      %25 = vector.broadcast %24 : vector<24x1xf32> to vector<24x256xf32>
      %26 = arith.cmpf oeq, %18, %25 : vector<24x256xf32>
      %c2147483647_i32 = arith.constant 2147483647 : i32
      %27 = vector.broadcast %c2147483647_i32 : i32 to vector<24x256xi32>
      %28 = arith.select %26, %22, %27 : vector<24x256xi1>, vector<24x256xi32>
      %cst_16 = arith.constant dense<2147483647> : vector<24xi32>
      %29 = vector.multi_reduction <minsi>, %28, %cst_16 [1] : vector<24x256xi32> to vector<24xi32>
      %30 = vector.shape_cast %29 : vector<24xi32> to vector<24x1xi32>
      %31 = arith.cmpf olt, %24, %arg13 : vector<24x1xf32>
      %32 = arith.select %31, %24, %arg13 : vector<24x1xi1>, vector<24x1xf32>
      %33 = arith.select %31, %30, %arg14 : vector<24x1xi1>, vector<24x1xi32>
      scf.yield %32, %33 : vector<24x1xf32>, vector<24x1xi32>
    }
    %c2_i32_7 = arith.constant 2 : i32
    %c0_8 = arith.constant 0 : index
    %c0_9 = arith.constant 0 : index
    %9 = vector.load %arg10[%c0_8, %c0_9] : memref<24x1xf32, #tpu.memory_space<vmem>>, vector<24x1xf32>
    tpu.vector_store %arg10[%c0_8, %c0_9], %8#0 {strides = array<i32>} : memref<24x1xf32, #tpu.memory_space<vmem>>, vector<24x1xf32>,
    %c0_10 = arith.constant 0 : index
    %c0_11 = arith.constant 0 : index
    %10 = vector.load %arg11[%c0_10, %c0_11] : memref<24x1xi32, #tpu.memory_space<vmem>>, vector<24x1xi32>
    tpu.vector_store %arg11[%c0_10, %c0_11], %8#1 {strides = array<i32>} : memref<24x1xi32, #tpu.memory_space<vmem>>, vector<24x1xi32>,
    %c1_i32_12 = arith.constant 1 : i32
    %11 = arith.cmpi eq, %arg1, %c1_i32_12 : i32
    %12 = arith.extui %11 : i1 to i32
    %c0_i32_13 = arith.constant 0 : i32
    %13 = arith.cmpi ne, %12, %c0_i32_13 : i32
    scf.if %13 {
      %c0_14 = arith.constant 0 : index
      %c0_15 = arith.constant 0 : index
      %14 = vector.load %arg11[%c0_14, %c0_15] : memref<24x1xi32, #tpu.memory_space<vmem>>, vector<24x1xi32>
      %15 = vector.shape_cast %14 : vector<24x1xi32> to vector<24x1xi32>
      %16 = vector.broadcast %15 : vector<24x1xi32> to vector<24x128xi32>
      %c0_16 = arith.constant 0 : index
      %c0_17 = arith.constant 0 : index
      %17 = vector.load %arg8[%c0_16, %c0_17] : memref<24x128xi32, #tpu.memory_space<vmem>>, vector<24x128xi32>
      tpu.vector_store %arg8[%c0_16, %c0_17], %16 {strides = array<i32>} : memref<24x128xi32, #tpu.memory_space<vmem>>, vector<24x128xi32>,
    } else {
    }
    return
  }
  func.func @transform_0(%arg0: i32, %arg1: i32) -> (i32, i32) {
    %c0_i32 = arith.constant 0 : i32
    %c0_i32_0 = arith.constant 0 : i32
    return %arg0, %c0_i32 : i32, i32
  }
  func.func @transform_1(%arg0: i32, %arg1: i32) -> (i32, i32) {
    %c0_i32 = arith.constant 0 : i32
    %c0_i32_0 = arith.constant 0 : i32
    %c0_i32_1 = arith.constant 0 : i32
    return %c0_i32, %c0_i32_0 : i32, i32
  }
  func.func @transform_2(%arg0: i32, %arg1: i32) -> (i32, i32) {
    %c0_i32 = arith.constant 0 : i32
    %c0_i32_0 = arith.constant 0 : i32
    %c0_i32_1 = arith.constant 0 : i32
    return %c0_i32, %c0_i32_0 : i32, i32
  }
  func.func @transform_3(%arg0: i32, %arg1: i32) -> (i32, i32) {
    %c0_i32 = arith.constant 0 : i32
    %c0_i32_0 = arith.constant 0 : i32
    %c0_i32_1 = arith.constant 0 : i32
    return %c0_i32, %c0_i32_0 : i32, i32
  }
  func.func @transform_4(%arg0: i32, %arg1: i32) -> (i32, i32) {
    %c0_i32 = arith.constant 0 : i32
    %c0_i32_0 = arith.constant 0 : i32
    %c0_i32_1 = arith.constant 0 : i32
    return %c0_i32, %c0_i32_0 : i32, i32
  }
  func.func @transform_5(%arg0: i32, %arg1: i32) -> (i32, i32) {
    %c0_i32 = arith.constant 0 : i32
    %c0_i32_0 = arith.constant 0 : i32
    return %c0_i32, %arg1 : i32, i32
  }
  func.func @transform_6(%arg0: i32, %arg1: i32) -> (i32, i32) {
    %c0_i32 = arith.constant 0 : i32
    %c0_i32_0 = arith.constant 0 : i32
    return %arg0, %c0_i32 : i32, i32
  }
}

</mosaic_0001>

<llo_original>
// kernel: tpu_custom_call.1
$region0: #{tpu_custom_call.1}
  #allocation0 [shape = 'u32[]', space=smem, size = 0x4, offset = 0x4, fixed_abs, tag = 'smem constant byte address 0x4 - core index']
  #allocation1 [shape = 'u32[72,128]{1,0:T(1,128)}', space=vmem, size = 0x9000, scoped, tag = 'internal scratch']
  #allocation2 [shape = 'f32[24,8]{1,0:T(8,128)}', space=vmem, size = 0x3000, scoped, tag = 'scratch operand']
  #allocation3 [shape = 'f32[24,1]{1,0:T(8,128)}', space=vmem, size = 0x3000, scoped, tag = 'scratch operand']
  #allocation4 [shape = 's32[24,1]{1,0:T(8,128)}', space=vmem, size = 0x3000, scoped, tag = 'scratch operand']
  %s0 = inlined_call_operand.hbm [shape: f32[24,128], index: 0, kind: input, shape index: {}]
  %s1 = inlined_call_operand.vmem [shape: f32[128,128], index: 1, kind: input, shape index: {}]
  %s2 = inlined_call_operand.vmem [shape: f32[1,128], index: 2, kind: input, shape index: {}]
  %s3 = inlined_call_operand.vmem [shape: f32[128,8], index: 3, kind: input, shape index: {}]
  %s4 = inlined_call_operand.vmem [shape: f32[1,8], index: 4, kind: input, shape index: {}]
  %s5 = inlined_call_operand.hbm [shape: f32[8,1024], index: 5, kind: input, shape index: {}]
  %s6 = inlined_call_operand.hbm [shape: s32[24,128], index: 6, kind: output, shape index: {}]
  %s7 = sld [smem:[#allocation0]]
  $region80: #{tpu_custom_call.1} parent=0
    _
  %s9 = ssub.s32 1, %s7
  %s10 = scalar_select 0, %s9, %s7
  $region1: #{tpu_custom_call.1} parent=0
    #allocation5 [shape = 'u8[12288]{0}', space=vmem, size = 0x3000, scoped, tag = 'input window, operand 0, single buffered']
    #allocation6 [shape = 's32[2]{0}', space=sflag, size = 0x8, scoped, tag = 'scoped memory for tpu_custom_call.1']
    #allocation7 [shape = 's32[2]{0}', space=sflag, size = 0x8, scoped, tag = 'scoped memory for tpu_custom_call.1']
    #allocation8 [shape = 'u8[32768]{0}', space=vmem, size = 0x8000, scoped, tag = 'input window, operand 5']
    #allocation9 [shape = 's32[2]{0}', space=sflag, size = 0x8, scoped, tag = 'scoped memory for tpu_custom_call.1']
    #allocation10 [shape = 'u8[12288]{0}', space=vmem, size = 0x3000, scoped, tag = 'output window, operand 0, single buffered']
    %11 = vsyncpa [#allocation6], 0
    %12 = vsyncpa [#allocation9], 0
    %s13 = scalar_lea.sflag [#allocation9], 1
    %14 = vsyncpa %s13, 0
    %15 = vsyncpa [#allocation7], 0
    loop: start=0, step=1, limit=4
    $region2: #{tpu_custom_call.1} parent=1 // loop_pre_header
      _
    $region3: #{tpu_custom_call.1} parent=1 // loop_header
      %s17 = sphi 0, %s21
      %p18 = scmp.ge.s32.totalorder %s17, 4
      %s24 = sphi 0, %s36
      %s25 = sphi 0, %s32
      %s26 = sphi 0, %s24
      %s27 = sphi 0, %s25
      %s28 = sphi 0, %s26
      %s29 = sphi 0, %s27
      %s39 = sphi 0, %s41
      %s42 = sphi 0, %s39
      %s43 = sphi 0, %s42
      %s59 = sphi 0, %s43
      %s63 = sphi 0, %s63
      %s65 = sphi 0, %s63
      %s66 = sphi 0, %s65
      %s80 = sphi 0, %s66
      %s84 = sphi 0, %s84
      %s86 = sphi 0, %s84
      %s87 = sphi 0, %s86
      %s101 = sphi 0, %s87
      %s105 = sphi 0, %s105
      %s107 = sphi 0, %s105
      %s108 = sphi 0, %s107
      %s122 = sphi 0, %s108
      %s126 = sphi 0, %s126
      %s128 = sphi 0, %s126
      %s129 = sphi 0, %s128
      %s143 = sphi 0, %s129
      %s149 = sphi 0, %s151
      %s152 = sphi 0, %s149
      %s153 = sphi 0, %s152
      %s169 = sphi 0, %s153
      %s175 = sphi 0, %s177
      %s178 = sphi 0, %s175
      %s179 = sphi 0, %s178
      %s195 = sphi 0, %s179
    $region4: #{tpu_custom_call.1} parent=1 // loop_header_branch
      %20 = sbr.rel (%p18) target = $region8
    $region5: #{tpu_custom_call.1} parent=1 // loop_body
      %s22 = ssub.s32 %s17, 1
      %s23 = ssub.s32 %s17, 2
      %s30 = sadd.s32 1, %s25
      %p31 = scmp.ge.s32.totalorder %s30, 2
      %s32 = scalar_select %p31, 0, %s30
      %s33 = sadd.s32 1, %s24
      %s34 = scalar_select %p31, %s33, %s24
      %p35 = scmp.ge.s32.totalorder %s34, 1
      %s36 = scalar_select %p35, 0, %s34
      %s37 = ssub.s32 %s24, %s36
      %p38 = scmp.eq.s32.totalorder %s37, 0
      %s40 = sadd.s32 %s39, 1
      %s41 = scalar_select %p38, %s39, %s40
      %p44 = pneg %p38
      %p45 = scmp.eq.s32.totalorder %s17, 1
      %p46 = por %p44, %p45
      %p47 = scmp.ne.s32.totalorder %s39, %s42
      %p48 = scmp.eq.s32.totalorder %s17, 0
      %p49 = por %p47, %p48
      %p50 = scmp.ne.s32.totalorder %s39, %s42
      %p51 = scmp.eq.s32.totalorder %s22, 1
      %p52 = por %p50, %p51
      %p53 = scmp.ne.s32.totalorder %s42, %s43
      %p54 = scmp.eq.s32.totalorder %s22, 0
      %p55 = por %p53, %p54
      %p56 = scmp.ne.s32.totalorder %s42, %s43
      %p57 = scmp.eq.s32.totalorder %s23, 1
      %p58 = por %p56, %p57
      %p60 = scmp.ne.s32.totalorder %s43, %s59
      %p61 = scmp.eq.s32.totalorder %s23, 0
      %p62 = por %p60, %p61
      %s64 = sadd.s32 %s63, 1
      %p67 = scmp.eq.s32.totalorder %s17, 1
      %p68 = scmp.ne.s32.totalorder %s63, %s65
      %p69 = scmp.eq.s32.totalorder %s17, 0
      %p70 = por %p68, %p69
      %p71 = scmp.ne.s32.totalorder %s63, %s65
      %p72 = scmp.eq.s32.totalorder %s22, 1
      %p73 = por %p71, %p72
      %p74 = scmp.ne.s32.totalorder %s65, %s66
      %p75 = scmp.eq.s32.totalorder %s22, 0
      %p76 = por %p74, %p75
      %p77 = scmp.ne.s32.totalorder %s65, %s66
      %p78 = scmp.eq.s32.totalorder %s23, 1
      %p79 = por %p77, %p78
      %p81 = scmp.ne.s32.totalorder %s66, %s80
      %p82 = scmp.eq.s32.totalorder %s23, 0
      %p83 = por %p81, %p82
      %s85 = sadd.s32 %s84, 1
      %p88 = scmp.eq.s32.totalorder %s17, 1
      %p89 = scmp.ne.s32.totalorder %s84, %s86
      %p90 = scmp.eq.s32.totalorder %s17, 0
      %p91 = por %p89, %p90
      %p92 = scmp.ne.s32.totalorder %s84, %s86
      %p93 = scmp.eq.s32.totalorder %s22, 1
      %p94 = por %p92, %p93
      %p95 = scmp.ne.s32.totalorder %s86, %s87
      %p96 = scmp.eq.s32.totalorder %s22, 0
      %p97 = por %p95, %p96
      %p98 = scmp.ne.s32.totalorder %s86, %s87
      %p99 = scmp.eq.s32.totalorder %s23, 1
      %p100 = por %p98, %p99
      %p102 = scmp.ne.s32.totalorder %s87, %s101
      %p103 = scmp.eq.s32.totalorder %s23, 0
      %p104 = por %p102, %p103
      %s106 = sadd.s32 %s105, 1
      %p109 = scmp.eq.s32.totalorder %s17, 1
      %p110 = scmp.ne.s32.totalorder %s105, %s107
      %p111 = scmp.eq.s32.totalorder %s17, 0
      %p112 = por %p110, %p111
      %p113 = scmp.ne.s32.totalorder %s105, %s107
      %p114 = scmp.eq.s32.totalorder %s22, 1
      %p115 = por %p113, %p114
      %p116 = scmp.ne.s32.totalorder %s107, %s108
      %p117 = scmp.eq.s32.totalorder %s22, 0
      %p118 = por %p116, %p117
      %p119 = scmp.ne.s32.totalorder %s107, %s108
      %p120 = scmp.eq.s32.totalorder %s23, 1
      %p121 = por %p119, %p120
      %p123 = scmp.ne.s32.totalorder %s108, %s122
      %p124 = scmp.eq.s32.totalorder %s23, 0
      %p125 = por %p123, %p124
      %s127 = sadd.s32 %s126, 1
      %p130 = scmp.eq.s32.totalorder %s17, 1
      %p131 = scmp.ne.s32.totalorder %s126, %s128
      %p132 = scmp.eq.s32.totalorder %s17, 0
      %p133 = por %p131, %p132
      %p134 = scmp.ne.s32.totalorder %s126, %s128
      %p135 = scmp.eq.s32.totalorder %s22, 1
      %p136 = por %p134, %p135
      %p137 = scmp.ne.s32.totalorder %s128, %s129
      %p138 = scmp.eq.s32.totalorder %s22, 0
      %p139 = por %p137, %p138
      %p140 = scmp.ne.s32.totalorder %s128, %s129
      %p141 = scmp.eq.s32.totalorder %s23, 1
      %p142 = por %p140, %p141
      %p144 = scmp.ne.s32.totalorder %s129, %s143
      %p145 = scmp.eq.s32.totalorder %s23, 0
      %p146 = por %p144, %p145
      %s147 = ssub.s32 %s25, %s32
      %p148 = scmp.eq.s32.totalorder %s147, 0
      %s150 = sadd.s32 %s149, 1
      %s151 = scalar_select %p148, %s149, %s150
      %p154 = pneg %p148
      %p155 = scmp.eq.s32.totalorder %s17, 1
      %p156 = por %p154, %p155
      %p157 = scmp.ne.s32.totalorder %s149, %s152
      %p158 = scmp.eq.s32.totalorder %s17, 0
      %p159 = por %p157, %p158
      %p160 = scmp.ne.s32.totalorder %s149, %s152
      %p161 = scmp.eq.s32.totalorder %s22, 1
      %p162 = por %p160, %p161
      %p163 = scmp.ne.s32.totalorder %s152, %s153
      %p164 = scmp.eq.s32.totalorder %s22, 0
      %p165 = por %p163, %p164
      %p166 = scmp.ne.s32.totalorder %s152, %s153
      %p167 = scmp.eq.s32.totalorder %s23, 1
      %p168 = por %p166, %p167
      %p170 = scmp.ne.s32.totalorder %s153, %s169
      %p171 = scmp.eq.s32.totalorder %s23, 0
      %p172 = por %p170, %p171
      %s173 = ssub.s32 %s24, %s36
      %p174 = scmp.eq.s32.totalorder %s173, 0
      %s176 = sadd.s32 %s175, 1
      %s177 = scalar_select %p174, %s175, %s176
      %p180 = pneg %p174
      %p181 = scmp.eq.s32.totalorder %s17, 1
      %p182 = por %p180, %p181
      %p183 = scmp.ne.s32.totalorder %s175, %s178
      %p184 = scmp.eq.s32.totalorder %s17, 0
      %p185 = por %p183, %p184
      %p186 = scmp.ne.s32.totalorder %s175, %s178
      %p187 = scmp.eq.s32.totalorder %s22, 1
      %p188 = por %p186, %p187
      %p189 = scmp.ne.s32.totalorder %s178, %s179
      %p190 = scmp.eq.s32.totalorder %s22, 0
      %p191 = por %p189, %p190
      %p192 = scmp.ne.s32.totalorder %s178, %s179
      %p193 = scmp.eq.s32.totalorder %s23, 1
      %p194 = por %p192, %p193
      %p196 = scmp.ne.s32.totalorder %s179, %s195
      %p197 = scmp.eq.s32.totalorder %s23, 0
      %p198 = por %p196, %p197
      %p199 = scmp.le.s32.totalorder 1, %s17
      %p200 = scmp.lt.s32.totalorder %s17, 3
      %p201 = pnand %p199, %p200
      %p202 = pneg %p201
      // Predicated region
      $region9: #{tpu_custom_call.1} parent=5 // pred_check
        _
      $region10: #{tpu_custom_call.1} parent=5 // pred_check_branch
        %204 = sbr.rel (%p201) target = $region12
      $region11: #{tpu_custom_call.1} parent=5 // pred_region
        %s205 = ssub.s32 %s17, 1
        // Predicated region
        $region13: #{tpu_custom_call.1} parent=11 // pred_check
          %p206 = pneg %p55
        $region14: #{tpu_custom_call.1} parent=11 // pred_check_branch
          %208 = sbr.rel (%p206) target = $region16
        $region15: #{tpu_custom_call.1} parent=11 // pred_region
          %s209 = smul.u32 3, %s26
          %211 = vsyncadd [#allocation6], 0
          %s212 = smul.addr %s209, 8
          %s213 = scalar_lea.hbm %s0, %s212
          %s214 = sshll.u32 %s213, 4
          %s215 = int_to_ptr.hbm [resolvable:$true] %s214
          %s216 = sshll.u32 [#allocation5], 4
          %s217 = int_to_ptr.vmem [resolvable:$true] %s216
          %222 = dma.hbm_to_vmem [thread:$0]  %s215, 384, %s217, [#allocation6], 128, 128, 8
        $region16: #{tpu_custom_call.1} parent=11 // pred_fallthru
          _
        // Predicated region
        $region17: #{tpu_custom_call.1} parent=11 // pred_check
          %p223 = pneg %p76
        $region18: #{tpu_custom_call.1} parent=11 // pred_check_branch
          %225 = sbr.rel (%p223) target = $region20
        $region19: #{tpu_custom_call.1} parent=11 // pred_region
          _
        $region20: #{tpu_custom_call.1} parent=11 // pred_fallthru
          _
        // Predicated region
        $region21: #{tpu_custom_call.1} parent=11 // pred_check
          %p226 = pneg %p97
        $region22: #{tpu_custom_call.1} parent=11 // pred_check_branch
          %228 = sbr.rel (%p226) target = $region24
        $region23: #{tpu_custom_call.1} parent=11 // pred_region
          _
        $region24: #{tpu_custom_call.1} parent=11 // pred_fallthru
          _
        // Predicated region
        $region25: #{tpu_custom_call.1} parent=11 // pred_check
          %p229 = pneg %p118
        $region26: #{tpu_custom_call.1} parent=11 // pred_check_branch
          %231 = sbr.rel (%p229) target = $region28
        $region27: #{tpu_custom_call.1} parent=11 // pred_region
          _
        $region28: #{tpu_custom_call.1} parent=11 // pred_fallthru
          _
        // Predicated region
        $region29: #{tpu_custom_call.1} parent=11 // pred_check
          %p232 = pneg %p139
        $region30: #{tpu_custom_call.1} parent=11 // pred_check_branch
          %234 = sbr.rel (%p232) target = $region32
        $region31: #{tpu_custom_call.1} parent=11 // pred_region
          _
        $region32: #{tpu_custom_call.1} parent=11 // pred_fallthru
          _
      $region12: #{tpu_custom_call.1} parent=5 // pred_fallthru
        _
      %p235 = scmp.lt.s32.totalorder %s17, 2
      // Predicated region
      $region33: #{tpu_custom_call.1} parent=5 // pred_check
        %p236 = pneg %p235
      $region34: #{tpu_custom_call.1} parent=5 // pred_check_branch
        %238 = sbr.rel (%p236) target = $region36
      $region35: #{tpu_custom_call.1} parent=5 // pred_region
        // Predicated region
        $region37: #{tpu_custom_call.1} parent=35 // pred_check
          %p239 = pneg %p159
        $region38: #{tpu_custom_call.1} parent=35 // pred_check_branch
          %241 = sbr.rel (%p239) target = $region40
        $region39: #{tpu_custom_call.1} parent=35 // pred_region
          %s242 = sand.u32 %s149, 1
          %s243 = scalar_lea.sflag [#allocation9], %s242
          %s244 = sand.u32 %s149, 1
          %s245 = smul.addr %s244, 32
          %s246 = scalar_lea.vmem [#allocation8], %s245
          %s247 = smul.u32 4, %s25
          %249 = vsyncadd %s243, 0
          %s250 = smul.addr %s247, 8
          %s251 = scalar_lea.hbm %s5, %s250
          %s253 = sshll.u32 %s251, 4
          %s254 = int_to_ptr.hbm [resolvable:$true] %s253
          %s255 = sshll.u32 %s246, 4
          %s256 = int_to_ptr.vmem [resolvable:$true] %s255
          %258 = dma.hbm_to_vmem [thread:$0]  %s254, 512, %s256, %s243
        $region40: #{tpu_custom_call.1} parent=35 // pred_fallthru
          _
      $region36: #{tpu_custom_call.1} parent=5 // pred_fallthru
        _
      %p259 = scmp.le.s32.totalorder 1, %s17
      %p260 = scmp.lt.s32.totalorder %s17, 3
      %p261 = pnand %p259, %p260
      %p262 = pneg %p261
      // Predicated region
      $region41: #{tpu_custom_call.1} parent=5 // pred_check
        _
      $region42: #{tpu_custom_call.1} parent=5 // pred_check_branch
        %264 = sbr.rel (%p261) target = $region44
      $region43: #{tpu_custom_call.1} parent=5 // pred_region
        %s265 = ssub.s32 %s17, 1
        // Predicated region
        $region45: #{tpu_custom_call.1} parent=43 // pred_check
          %p266 = pneg %p55
        $region46: #{tpu_custom_call.1} parent=43 // pred_check_branch
          %268 = sbr.rel (%p266) target = $region48
        $region47: #{tpu_custom_call.1} parent=43 // pred_region
          %270 = dma.done [#allocation6], 384
        $region48: #{tpu_custom_call.1} parent=43 // pred_fallthru
          _
        %s271 = sand.u32 %s152, 1
        %s272 = scalar_lea.sflag [#allocation9], %s271
        %s273 = sand.u32 %s152, 1
        %s274 = smul.addr %s273, 32
        %s275 = scalar_lea.vmem [#allocation8], %s274
        // Predicated region
        $region49: #{tpu_custom_call.1} parent=43 // pred_check
          %p276 = pneg %p165
        $region50: #{tpu_custom_call.1} parent=43 // pred_check_branch
          %278 = sbr.rel (%p276) target = $region52
        $region51: #{tpu_custom_call.1} parent=43 // pred_region
          %280 = dma.done %s272, 512
        $region52: #{tpu_custom_call.1} parent=43 // pred_fallthru
          _
        %p281 = pneg %p55
        %p282 = pneg %p52
        %p283 = pneg %p76
        %p284 = pneg %p73
        %p285 = pneg %p97
        %p286 = pneg %p94
        %p287 = pneg %p118
        %p288 = pneg %p115
        %p289 = pneg %p139
        %p290 = pneg %p136
        %s291 = sand.u32 %s152, 1
        %s292 = scalar_lea.sflag [#allocation9], %s291
        %s293 = sand.u32 %s152, 1
        %s294 = smul.addr %s293, 32
        %s295 = scalar_lea.vmem [#allocation8], %s294
        %p296 = pneg %p165
        %p297 = pneg %p162
        %p298 = pneg %p191
        %p299 = pneg %p188
        %s300 = smul.u32 3, %s26
        %s301 = smul.u32 4, %s27
        %s302 = smul.u32 3, %s26
        %p303 = scmp.eq.s32.totalorder %s27, 0
        // Predicated region
        $region53: #{tpu_custom_call.1} parent=43 // pred_check
          %p304 = pneg %p303
        $region54: #{tpu_custom_call.1} parent=43 // pred_check_branch
          %306 = sbr.rel (%p304) target = $region56
        $region55: #{tpu_custom_call.1} parent=43 // pred_region
          %v307 = vld [vmem:[#allocation5] sm:$0xff]
          %v308 = vld [vmem:[#allocation5 + $0x8] sm:$0xff]
          %v309 = vld [vmem:[#allocation5 + $0x10] sm:$0xff]
          %v310 = vld [vmem:[%s1] sm:$0xff]
          %v311 = vld [vmem:[%s1 + $0x8] sm:$0xff]
          %v312 = vld [vmem:[%s1 + $0x10] sm:$0xff]
          %v313 = vld [vmem:[%s1 + $0x18] sm:$0xff]
          %v314 = vld [vmem:[%s1 + $0x20] sm:$0xff]
          %v315 = vld [vmem:[%s1 + $0x28] sm:$0xff]
          %v316 = vld [vmem:[%s1 + $0x30] sm:$0xff]
          %v317 = vld [vmem:[%s1 + $0x38] sm:$0xff]
          %v318 = vld [vmem:[%s1 + $0x40] sm:$0xff]
          %v319 = vld [vmem:[%s1 + $0x48] sm:$0xff]
          %v320 = vld [vmem:[%s1 + $0x50] sm:$0xff]
          %v321 = vld [vmem:[%s1 + $0x58] sm:$0xff]
          %v322 = vld [vmem:[%s1 + $0x60] sm:$0xff]
          %v323 = vld [vmem:[%s1 + $0x68] sm:$0xff]
          %v324 = vld [vmem:[%s1 + $0x70] sm:$0xff]
          %v325 = vld [vmem:[%s1 + $0x78] sm:$0xff]
          %v326 = vld [vmem:[%s2] sm:$0x1]
          %v328 = vperm.slane %v326, 0
          %330 = vmatpush.msra.mxu0 %v325
          %331 = vmatpush.msra.mxu0 %v324
          %332 = vmatpush.msra.mxu0 %v323
          %333 = vmatpush.msra.mxu0 %v322
          %334 = vmatpush.msra.mxu0 %v321
          %335 = vmatpush.msra.mxu0 %v320
          %336 = vmatpush.msra.mxu0 %v319
          %337 = vmatpush.msra.mxu0 %v318
          %338 = vmatpush.msra.mxu0 %v317
          %339 = vmatpush.msra.mxu0 %v316
          %340 = vmatpush.msra.mxu0 %v315
          %341 = vmatpush.msra.mxu0 %v314
          %342 = vmatpush.msra.mxu0 %v313
          %343 = vmatpush.msra.mxu0 %v312
          %344 = vmatpush.msra.mxu0 %v311
          %345 = vmatpush.msra.mxu0 %v310
          %346 = vmatmul.f32.gmra.mxu0 %v307
          %v347 = vpop.f32.mrf.mxu0
          %v348 = vadd.f32 %v328, %v347
          %349 = vmatmul.f32.gmra.mxu0 %v308
          %v350 = vpop.f32.mrf.mxu0
          %v351 = vadd.f32 %v328, %v350
          %352 = vmatmul.f32.gmra.mxu0 %v309
          %v353 = vpop.f32.mrf.mxu0
          %v354 = vadd.f32 %v328, %v353
          %355 = vdwg.mxu0
          %v356 = vmax.f32 %v348, 0.0
          %v357 = vmax.f32 %v351, 0.0
          %v358 = vmax.f32 %v354, 0.0
          %v359 = vld [vmem:[%s3] sm:$0xff]
          %v360 = vld [vmem:[%s3 + $0x8] sm:$0xff]
          %v361 = vld [vmem:[%s3 + $0x10] sm:$0xff]
          %v362 = vld [vmem:[%s3 + $0x18] sm:$0xff]
          %v363 = vld [vmem:[%s3 + $0x20] sm:$0xff]
          %v364 = vld [vmem:[%s3 + $0x28] sm:$0xff]
          %v365 = vld [vmem:[%s3 + $0x30] sm:$0xff]
          %v366 = vld [vmem:[%s3 + $0x38] sm:$0xff]
          %v367 = vld [vmem:[%s3 + $0x40] sm:$0xff]
          %v368 = vld [vmem:[%s3 + $0x48] sm:$0xff]
          %v369 = vld [vmem:[%s3 + $0x50] sm:$0xff]
          %v370 = vld [vmem:[%s3 + $0x58] sm:$0xff]
          %v371 = vld [vmem:[%s3 + $0x60] sm:$0xff]
          %v372 = vld [vmem:[%s3 + $0x68] sm:$0xff]
          %v373 = vld [vmem:[%s3 + $0x70] sm:$0xff]
          %v374 = vld [vmem:[%s3 + $0x78] sm:$0xff]
          %v375 = vld [vmem:[%s4] sm:$0x1]
          %v377 = vperm.slane %v375, 0
          %379 = vmatpush.msra.mxu0 %v374
          %380 = vmatpush.msra.mxu0 %v373
          %381 = vmatpush.msra.mxu0 %v372
          %382 = vmatpush.msra.mxu0 %v371
          %383 = vmatpush.msra.mxu0 %v370
          %384 = vmatpush.msra.mxu0 %v369
          %385 = vmatpush.msra.mxu0 %v368
          %386 = vmatpush.msra.mxu0 %v367
          %387 = vmatpush.msra.mxu0 %v366
          %388 = vmatpush.msra.mxu0 %v365
          %389 = vmatpush.msra.mxu0 %v364
          %390 = vmatpush.msra.mxu0 %v363
          %391 = vmatpush.msra.mxu0 %v362
          %392 = vmatpush.msra.mxu0 %v361
          %393 = vmatpush.msra.mxu0 %v360
          %394 = vmatpush.msra.mxu0 %v359
          %395 = vmatmul.f32.gmra.mxu0 %v356
          %v396 = vpop.f32.mrf.mxu0
          %v397 = vadd.f32 %v377, %v396
          %398 = vmatmul.f32.gmra.mxu0 %v357
          %v399 = vpop.f32.mrf.mxu0
          %v400 = vadd.f32 %v377, %v399
          %401 = vmatmul.f32.gmra.mxu0 %v358
          %v402 = vpop.f32.mrf.mxu0
          %v403 = vadd.f32 %v377, %v402
          %404 = vdwg.mxu0
          %vm405 = vcmask 64512
          %406 = vst.msk [vmem:[#allocation2] sm:$0xff] %vm405, %v397
          %407 = vst.msk [vmem:[#allocation2 + $0x8] sm:$0xff] %vm405, %v400
          %408 = vst.msk [vmem:[#allocation2 + $0x10] sm:$0xff] %vm405, %v403
          %vm409 = vcmask 7168
          %410 = vst.msk [vmem:[#allocation3] sm:$0xff] %vm409, 3e+38
          %411 = vst.msk [vmem:[#allocation3 + $0x8] sm:$0xff] %vm409, 3e+38
          %412 = vst.msk [vmem:[#allocation3 + $0x10] sm:$0xff] %vm409, 3e+38
          %413 = vst.msk [vmem:[#allocation4] sm:$0xff] %vm409, 0
          %414 = vst.msk [vmem:[#allocation4 + $0x8] sm:$0xff] %vm409, 0
          %415 = vst.msk [vmem:[#allocation4 + $0x10] sm:$0xff] %vm409, 0
        $region56: #{tpu_custom_call.1} parent=43 // pred_fallthru
          _
        %v416 = vld [vmem:[#allocation2] sm:$0xff]
        %v417 = vld [vmem:[#allocation2 + $0x8] sm:$0xff]
        %v418 = vld [vmem:[#allocation2 + $0x10] sm:$0xff]
        %s419 = smul.u32 %s27, 512
        %v420 = vld [vmem:[#allocation3] sm:$0xff]
        %v421 = vld [vmem:[#allocation3 + $0x8] sm:$0xff]
        %v422 = vld [vmem:[#allocation3 + $0x10] sm:$0xff]
        %v423 = vld [vmem:[#allocation4] sm:$0xff]
        %v424 = vld [vmem:[#allocation4 + $0x8] sm:$0xff]
        %v425 = vld [vmem:[#allocation4 + $0x10] sm:$0xff]
        loop: start=0, step=1, limit=2
        $region57: #{tpu_custom_call.1} parent=43 // loop_pre_header
          _
        $region58: #{tpu_custom_call.1} parent=43 // loop_header
          %s427 = sphi 0, %s431
          %p428 = scmp.ge.s32.totalorder %s427, 2
          %v432 = vphi %v420, %v586
          %v433 = vphi %v421, %v587
          %v434 = vphi %v422, %v588
          %v435 = vphi %v423, %v589
          %v436 = vphi %v424, %v590
          %v437 = vphi %v425, %v591
        $region59: #{tpu_custom_call.1} parent=43 // loop_header_branch
          %430 = sbr.rel (%p428) target = $region63
        $region60: #{tpu_custom_call.1} parent=43 // loop_body
          %s438 = smul.u32 %s427, 256
          %s439 = sshra.s32 %s438, 7
          %s440 = sand.u32 %s438, 127
          %s441 = smul.addr %s439, 8
          %s442 = scalar_lea.vmem %s275, %s441 [#allocation8]
          %v443 = vld [vmem:[%s442] sm:$0xff]
          %v444 = vld [vmem:[%s442 + $0x8] sm:$0xff]
          %vm445 = vcmask 64512
          %v447 = vsel %vm445, %v416, 0
          %v450 = vsel %vm445, %v417, 0
          %v453 = vsel %vm445, %v418, 0
          %455 = vmatpush.msra.mxu0 0.0
          %456 = vmatpush.msra.mxu0 0.0
          %457 = vmatpush.msra.mxu0 0.0
          %458 = vmatpush.msra.mxu0 0.0
          %459 = vmatpush.msra.mxu0 0.0
          %460 = vmatpush.msra.mxu0 0.0
          %461 = vmatpush.msra.mxu0 0.0
          %462 = vmatpush.msra.mxu0 0.0
          %463 = vmatpush.msra.mxu0 0.0
          %464 = vmatpush.msra.mxu0 0.0
          %465 = vmatpush.msra.mxu0 0.0
          %466 = vmatpush.msra.mxu0 0.0
          %467 = vmatpush.msra.mxu0 0.0
          %468 = vmatpush.msra.mxu0 0.0
          %469 = vmatpush.msra.mxu0 0.0
          %470 = vmatpush.msra.mxu0 %v443
          %471 = vmatmul.f32.gmra.mxu0 %v447
          %v472 = vpop.f32.mrf.mxu0
          %v473 = vadd.f32 0.0, %v472
          %474 = vmatmul.f32.gmra.mxu0 %v450
          %v475 = vpop.f32.mrf.mxu0
          %v476 = vadd.f32 0.0, %v475
          %477 = vmatmul.f32.gmra.mxu0 %v453
          %v478 = vpop.f32.mrf.mxu0
          %v479 = vadd.f32 0.0, %v478
          %480 = vdwg.mxu0
          %481 = vmatpush.msra.mxu0 0.0
          %482 = vmatpush.msra.mxu0 0.0
          %483 = vmatpush.msra.mxu0 0.0
          %484 = vmatpush.msra.mxu0 0.0
          %485 = vmatpush.msra.mxu0 0.0
          %486 = vmatpush.msra.mxu0 0.0
          %487 = vmatpush.msra.mxu0 0.0
          %488 = vmatpush.msra.mxu0 0.0
          %489 = vmatpush.msra.mxu0 0.0
          %490 = vmatpush.msra.mxu0 0.0
          %491 = vmatpush.msra.mxu0 0.0
          %492 = vmatpush.msra.mxu0 0.0
          %493 = vmatpush.msra.mxu0 0.0
          %494 = vmatpush.msra.mxu0 0.0
          %495 = vmatpush.msra.mxu0 0.0
          %496 = vmatpush.msra.mxu0 %v444
          %497 = vmatmul.f32.gmra.mxu0 %v447
          %v498 = vpop.f32.mrf.mxu0
          %v499 = vadd.f32 0.0, %v498
          %500 = vmatmul.f32.gmra.mxu0 %v450
          %v501 = vpop.f32.mrf.mxu0
          %v502 = vadd.f32 0.0, %v501
          %503 = vmatmul.f32.gmra.mxu0 %v453
          %v504 = vpop.f32.mrf.mxu0
          %v505 = vadd.f32 0.0, %v504
          %506 = vdwg.mxu0
          %v507 = vlaneseq
          %v508 = vand.u32 %v507, 127
          %v509 = vadd.s32 %v508, 128
          %s510 = sadd.s32 %s419, %s438
          %v511 = vstv %s510
          %v512 = vadd.s32 %v508, %v511
          %v513 = vadd.s32 %v509, %v511
          %v514 = vmin.f32 %v473, %v499
          %515 = vmin.xlane.f32.xlu0 %v514
          %v516 = vpop.xlane.xlu0 %515
          %v517 = vmin.f32 %v476, %v502
          %518 = vmin.xlane.f32.xlu0 %v517
          %v519 = vpop.xlane.xlu0 %518
          %v520 = vmin.f32 %v479, %v505
          %521 = vmin.xlane.f32.xlu0 %v520
          %v522 = vpop.xlane.xlu0 %521
          %vm523 = vcmp.eq.f32.partialorder %v473, %v516
          %vm524 = vcmp.eq.f32.partialorder %v499, %v516
          %vm525 = vcmp.eq.f32.partialorder %v476, %v519
          %vm526 = vcmp.eq.f32.partialorder %v502, %v519
          %vm527 = vcmp.eq.f32.partialorder %v479, %v522
          %vm528 = vcmp.eq.f32.partialorder %v505, %v522
          %v529 = vsel %vm523, %v512, 2147483647
          %v530 = vsel %vm524, %v513, 2147483647
          %v531 = vsel %vm525, %v512, 2147483647
          %v532 = vsel %vm526, %v513, 2147483647
          %v533 = vsel %vm527, %v512, 2147483647
          %v534 = vsel %vm528, %v513, 2147483647
          %vm535 = vcmp.lt.s32.totalorder %v529, %v530
          %v536 = vsel %vm535, %v529, %v530
          %v537 = vand.u32 %v536, 65535
          %v538 = vshra.s32 %v536, 16
          %v539 = vcvt.s32.f32 %v537
          %v540 = vcvt.s32.f32 %v538
          %541 = vmin.xlane.f32.xlu0 %v540
          %v542 = vpop.xlane.xlu0 %541
          %vm543 = vcmp.eq.f32.partialorder %v540, %v542
          %v544 = vsel %vm543, %v539, inf
          %545 = vmin.xlane.f32.xlu0 %v544
          %v546 = vpop.xlane.xlu0 %545
          %v547 = vcvt.f32.s32 %v546
          %v548 = vcvt.f32.s32 %v542
          %v549 = vshll.u32 %v548, 16
          %v550 = vadd.s32 %v549, %v547
          %vm551 = vcmp.lt.s32.totalorder %v531, %v532
          %v552 = vsel %vm551, %v531, %v532
          %v553 = vand.u32 %v552, 65535
          %v554 = vshra.s32 %v552, 16
          %v555 = vcvt.s32.f32 %v553
          %v556 = vcvt.s32.f32 %v554
          %557 = vmin.xlane.f32.xlu0 %v556
          %v558 = vpop.xlane.xlu0 %557
          %vm559 = vcmp.eq.f32.partialorder %v556, %v558
          %v560 = vsel %vm559, %v555, inf
          %561 = vmin.xlane.f32.xlu0 %v560
          %v562 = vpop.xlane.xlu0 %561
          %v563 = vcvt.f32.s32 %v562
          %v564 = vcvt.f32.s32 %v558
          %v565 = vshll.u32 %v564, 16
          %v566 = vadd.s32 %v565, %v563
          %vm567 = vcmp.lt.s32.totalorder %v533, %v534
          %v568 = vsel %vm567, %v533, %v534
          %v569 = vand.u32 %v568, 65535
          %v570 = vshra.s32 %v568, 16
          %v571 = vcvt.s32.f32 %v569
          %v572 = vcvt.s32.f32 %v570
          %573 = vmin.xlane.f32.xlu0 %v572
          %v574 = vpop.xlane.xlu0 %573
          %vm575 = vcmp.eq.f32.partialorder %v572, %v574
          %v576 = vsel %vm575, %v571, inf
          %577 = vmin.xlane.f32.xlu0 %v576
          %v578 = vpop.xlane.xlu0 %577
          %v579 = vcvt.f32.s32 %v578
          %v580 = vcvt.f32.s32 %v574
          %v581 = vshll.u32 %v580, 16
          %v582 = vadd.s32 %v581, %v579
          %vm583 = vcmp.lt.f32.partialorder %v516, %v432
          %vm584 = vcmp.lt.f32.partialorder %v519, %v433
          %vm585 = vcmp.lt.f32.partialorder %v522, %v434
          %v586 = vsel %vm583, %v516, %v432
          %v587 = vsel %vm584, %v519, %v433
          %v588 = vsel %vm585, %v522, %v434
          %v589 = vsel %vm583, %v550, %v435
          %v590 = vsel %vm584, %v566, %v436
          %v591 = vsel %vm585, %v582, %v437
        $region61: #{tpu_custom_call.1} parent=43 // loop_footer
          %s431 = sadd.s32 1, %s427
        $region62: #{tpu_custom_call.1} parent=43 // loop_footer_branch
          %426 = sbr.rel target = $region58
        $region63: #{tpu_custom_call.1} parent=43 // loop_exit
          _
        %vm592 = vcmask 7168
        %593 = vst.msk [vmem:[#allocation3] sm:$0xff] %vm592, %v432
        %594 = vst.msk [vmem:[#allocation3 + $0x8] sm:$0xff] %vm592, %v433
        %595 = vst.msk [vmem:[#allocation3 + $0x10] sm:$0xff] %vm592, %v434
        %596 = vst.msk [vmem:[#allocation4] sm:$0xff] %vm592, %v435
        %597 = vst.msk [vmem:[#allocation4 + $0x8] sm:$0xff] %vm592, %v436
        %598 = vst.msk [vmem:[#allocation4 + $0x10] sm:$0xff] %vm592, %v437
        %p599 = scmp.eq.s32.totalorder %s27, 1
        // Predicated region
        $region64: #{tpu_custom_call.1} parent=43 // pred_check
          %p600 = pneg %p599
        $region65: #{tpu_custom_call.1} parent=43 // pred_check_branch
          %602 = sbr.rel (%p600) target = $region67
        $region66: #{tpu_custom_call.1} parent=43 // pred_region
          %v603 = vld [vmem:[#allocation4] sm:$0xff]
          %v604 = vld [vmem:[#allocation4 + $0x8] sm:$0xff]
          %v605 = vld [vmem:[#allocation4 + $0x10] sm:$0xff]
          %606 = vset.pattern.permute.xlu0 0
          %607 = vperm.xlu0 %606, %v603
          %v608 = vpop.permute.xlu0 %607
          %609 = vset.pattern.permute.xlu0 0
          %610 = vperm.xlu0 %609, %v604
          %v611 = vpop.permute.xlu0 %610
          %612 = vset.pattern.permute.xlu0 0
          %613 = vperm.xlu0 %612, %v605
          %v614 = vpop.permute.xlu0 %613
          %615 = vst [vmem:[#allocation10] sm:$0xff] %v608
          %616 = vst [vmem:[#allocation10 + $0x8] sm:$0xff] %v611
          %617 = vst [vmem:[#allocation10 + $0x10] sm:$0xff] %v614
        $region67: #{tpu_custom_call.1} parent=43 // pred_fallthru
          _
        // Predicated region
        $region68: #{tpu_custom_call.1} parent=43 // pred_check
          %p618 = pneg %p188
        $region69: #{tpu_custom_call.1} parent=43 // pred_check_branch
          %620 = sbr.rel (%p618) target = $region71
        $region70: #{tpu_custom_call.1} parent=43 // pred_region
          %s621 = smul.u32 3, %s26
          %623 = vsyncadd [#allocation7], 0
          %s624 = smul.addr %s621, 8
          %s625 = scalar_lea.hbm %s6, %s624
          %s626 = sshll.u32 [#allocation10], 4
          %s627 = int_to_ptr.vmem [resolvable:$true] %s626
          %s628 = sshll.u32 %s625, 4
          %s629 = int_to_ptr.hbm [resolvable:$true] %s628
          %634 = dma.vmem_to_hbm [thread:$0]  %s627, 384, %s629, [#allocation7], 128, 128, 8
        $region71: #{tpu_custom_call.1} parent=43 // pred_fallthru
          _
        // Predicated region
        $region72: #{tpu_custom_call.1} parent=43 // pred_check
          %p635 = pneg %p188
        $region73: #{tpu_custom_call.1} parent=43 // pred_check_branch
          %637 = sbr.rel (%p635) target = $region75
        $region74: #{tpu_custom_call.1} parent=43 // pred_region
          %639 = dma.done [#allocation7], 384
        $region75: #{tpu_custom_call.1} parent=43 // pred_fallthru
          _
      $region44: #{tpu_custom_call.1} parent=5 // pred_fallthru
        _
      %p640 = scmp.le.s32.totalorder 2, %s17
      // Predicated region
      $region76: #{tpu_custom_call.1} parent=5 // pred_check
        %p641 = pneg %p640
      $region77: #{tpu_custom_call.1} parent=5 // pred_check_branch
        %643 = sbr.rel (%p641) target = $region79
      $region78: #{tpu_custom_call.1} parent=5 // pred_region
        %s644 = ssub.s32 %s17, 2
      $region79: #{tpu_custom_call.1} parent=5 // pred_fallthru
        _
    $region6: #{tpu_custom_call.1} parent=1 // loop_footer
      %s21 = sadd.s32 1, %s17
    $region7: #{tpu_custom_call.1} parent=1 // loop_footer_branch
      %16 = sbr.rel target = $region3
    $region8: #{tpu_custom_call.1} parent=1 // loop_exit
      _
    %645 = vsyncpa [#allocation6], 1
    %s646 = scalar_lea.sflag [#allocation6], 1
    %647 = vsyncpa %s646, 1
    %648 = vsyncpa [#allocation9], 1
    %s649 = scalar_lea.sflag [#allocation9], 1
    %650 = vsyncpa %s649, 1
    %651 = vsyncpa [#allocation7], 1
    %s652 = scalar_lea.sflag [#allocation7], 1
    %653 = vsyncpa %s652, 1

</llo_original>
